<compile_context>
chip_gen: v7x
topology: tpu7x:2x2x1
jax: 0.10.0
libtpu: 0.0.40
codegen_flags: <defaults>
</compile_context>

<pallas_src>
import jax
import jax.numpy as jnp
from jax.experimental import pallas as pl
from jax.experimental.pallas import tpu as pltpu

DROP_P = 0.1
BN_EPS = 1e-5
IN_FEATURES = 6
HIDDEN = 64


def _make_kernel(n_true: int, n_blk: int):
    """Build the kernel with the true batch size / tile size baked in."""
    inv_n = 1.0 / float(n_true)

    def kernel(x_ref, mask_ref,
               w1_ref, b1_ref, g1_ref, be1_ref,
               w2_ref, b2_ref, g2_ref, be2_ref,
               wo_ref, bo_ref,
               out_ref,
               s1_ref, ss1_ref, s2_ref, ss2_ref):
        p = pl.program_id(0)   # phase: 0 = BN1 stats, 1 = BN2 stats, 2 = emit
        i = pl.program_id(1)   # batch tile index

        # Rows of this tile that belong to the real (unpadded) batch.
        row = i * n_blk + jax.lax.broadcasted_iota(jnp.int32, (n_blk, 1), 0)
        valid = row < n_true

        # ---- layer_1 + ReLU (recomputed each phase; K=6 matmul is ~free) ----
        h1 = jnp.dot(x_ref[...], w1_ref[...],
                     preferred_element_type=jnp.float32) + b1_ref[...]
        h1 = jnp.maximum(h1, 0.0)

        @pl.when(p == 0)
        def _stats1():
            @pl.when(i == 0)
            def _init():
                s1_ref[...] = jnp.zeros_like(s1_ref)
                ss1_ref[...] = jnp.zeros_like(ss1_ref)
                s2_ref[...] = jnp.zeros_like(s2_ref)
                ss2_ref[...] = jnp.zeros_like(ss2_ref)

            hm = jnp.where(valid, h1, 0.0)
            s1_ref[...] += jnp.sum(hm, axis=0, keepdims=True)
            ss1_ref[...] += jnp.sum(hm * hm, axis=0, keepdims=True)

        @pl.when(p > 0)
        def _later():
            # ---- batchnorm1 from full-batch sums (single-pass variance) ----
            m1 = s1_ref[...] * inv_n
            v1 = ss1_ref[...] * inv_n - m1 * m1
            h1n = (h1 - m1) * (jax.lax.rsqrt(v1 + BN_EPS) * g1_ref[...]) + be1_ref[...]

            # ---- layer_2 + ReLU ----
            h2 = jnp.dot(h1n, w2_ref[...],
                         preferred_element_type=jnp.float32) + b2_ref[...]
            h2 = jnp.maximum(h2, 0.0)

            @pl.when(p == 1)
            def _stats2():
                hm2 = jnp.where(valid, h2, 0.0)
                s2_ref[...] += jnp.sum(hm2, axis=0, keepdims=True)
                ss2_ref[...] += jnp.sum(hm2 * hm2, axis=0, keepdims=True)

            @pl.when(p == 2)
            def _emit():
                # ---- batchnorm2 ----
                m2 = s2_ref[...] * inv_n
                v2 = ss2_ref[...] * inv_n - m2 * m2
                h2n = (h2 - m2) * (jax.lax.rsqrt(v2 + BN_EPS) * g2_ref[...]) + be2_ref[...]
                # ---- dropout: 0/1 keep mask (1/(1-p) scale folded into wo) ----
                hd = h2n * mask_ref[...]
                # ---- layer_out: VPU broadcast-mul + lane reduce (64 -> 1) ----
                out_ref[...] = (jnp.sum(hd * wo_ref[...], axis=-1, keepdims=True)
                                + bo_ref[...])

    return kernel


def nn_forward(x, params, dropout_keep_mask, *, block_rows=1024):
    """x: (N, 6) f32, dropout_keep_mask: (N, 64) f32 of {0,1} -> (N, 1) f32."""
    (w1, b1, g1, be1, w2, b2, g2, be2, wo, bo) = params
    n = x.shape[0]

    # Batch tile: a large multiple of 8, capped to the (padded) batch size.
    n_blk = min(block_rows, max(8, ((n + 7) // 8) * 8))
    num_blocks = pl.cdiv(n, n_blk)
    n_pad = num_blocks * n_blk
    if n_pad != n:
        x = jnp.pad(x, ((0, n_pad - n), (0, 0)))
        dropout_keep_mask = jnp.pad(dropout_keep_mask, ((0, n_pad - n), (0, 0)))

    # Fold the inverted-dropout scale into the output weights.
    wo_scaled = wo * (1.0 / (1.0 - DROP_P))

    batch_spec_in = pl.BlockSpec((n_blk, IN_FEATURES), lambda p, i: (i, 0))
    batch_spec_h = pl.BlockSpec((n_blk, HIDDEN), lambda p, i: (i, 0))

    def resident(shape):  # weights / BN params stay VMEM-resident across steps
        return pl.BlockSpec(shape, lambda p, i: (0, 0))

    out = pl.pallas_call(
        _make_kernel(n, n_blk),
        out_shape=jax.ShapeDtypeStruct((n_pad, 1), jnp.float32),
        grid=(3, num_blocks),
        in_specs=[
            batch_spec_in,                   # x
            batch_spec_h,                    # dropout keep mask
            resident((IN_FEATURES, HIDDEN)),  # w1
            resident((1, HIDDEN)),            # b1
            resident((1, HIDDEN)),            # gamma1
            resident((1, HIDDEN)),            # beta1
            resident((HIDDEN, HIDDEN)),       # w2
            resident((1, HIDDEN)),            # b2
            resident((1, HIDDEN)),            # gamma2
            resident((1, HIDDEN)),            # beta2
            resident((1, HIDDEN)),            # wo (as a row, scale folded in)
            resident((1, 1)),                 # bo
        ],
        out_specs=pl.BlockSpec((n_blk, 1), lambda p, i: (i, 0)),
        scratch_shapes=[pltpu.VMEM((1, HIDDEN), jnp.float32)] * 4,
        compiler_params=pltpu.CompilerParams(
            # Cross-tile BN-stat accumulation needs sequential traversal.
            dimension_semantics=("arbitrary", "arbitrary"),
        ),
    )(x, dropout_keep_mask, w1, b1, g1, be1, w2, b2, g2, be2, wo_scaled, bo)
    return out[:n]


def init_params(key):
    """Deterministic init matching PyTorch default shapes/init style."""
    def linear(k, fan_in, fan_out):
        kw, kb = jax.random.split(k)
        bound = 1.0 / (fan_in ** 0.5)
        w = jax.random.uniform(kw, (fan_in, fan_out), jnp.float32, -bound, bound)
        b = jax.random.uniform(kb, (1, fan_out), jnp.float32, -bound, bound)
        return w, b

    k1, k2, k3 = jax.random.split(key, 3)
    w1, b1 = linear(k1, IN_FEATURES, HIDDEN)
    w2, b2 = linear(k2, HIDDEN, HIDDEN)
    wo_col, bo = linear(k3, HIDDEN, 1)
    wo = wo_col.reshape(1, HIDDEN)          # keep layer_out weight as a row
    g1 = jnp.ones((1, HIDDEN), jnp.float32)
    be1 = jnp.zeros((1, HIDDEN), jnp.float32)
    g2 = jnp.ones((1, HIDDEN), jnp.float32)
    be2 = jnp.zeros((1, HIDDEN), jnp.float32)
    return (w1, b1, g1, be1, w2, b2, g2, be2, wo, bo)


if __name__ == "__main__":
    key = jax.random.PRNGKey(0)
    kx, kp, kd = jax.random.split(key, 3)

    N = 16  # batch
    x = jax.random.normal(kx, (N, IN_FEATURES), jnp.float32)
    params = init_params(kp)
    # Inverted-dropout keep mask (training mode, p=0.1), generated host-side.
    keep_mask = jax.random.bernoulli(kd, 1.0 - DROP_P, (N, HIDDEN)).astype(jnp.float32)

    out = nn_forward(x, params, keep_mask)
    jax.block_until_ready(out)

    assert out.shape == (N, 1) and out.dtype == jnp.float32
    assert bool(jnp.all(jnp.isfinite(out)))
    print("KERNEL_OK")
</pallas_src>

<mosaic_0001>
module attributes {stable_mosaic.version = 11 : i64} {
  func.func @kernel(%arg0: i32, %arg1: i32, %arg2: memref<16x6xf32, #tpu.memory_space<vmem>>, %arg3: memref<16x64xf32, #tpu.memory_space<vmem>>, %arg4: memref<6x64xf32, #tpu.memory_space<vmem>>, %arg5: memref<1x64xf32, #tpu.memory_space<vmem>>, %arg6: memref<1x64xf32, #tpu.memory_space<vmem>>, %arg7: memref<1x64xf32, #tpu.memory_space<vmem>>, %arg8: memref<64x64xf32, #tpu.memory_space<vmem>>, %arg9: memref<1x64xf32, #tpu.memory_space<vmem>>, %arg10: memref<1x64xf32, #tpu.memory_space<vmem>>, %arg11: memref<1x64xf32, #tpu.memory_space<vmem>>, %arg12: memref<1x64xf32, #tpu.memory_space<vmem>>, %arg13: memref<1x1xf32, #tpu.memory_space<vmem>>, %arg14: memref<16x1xf32, #tpu.memory_space<vmem>>, %arg15: memref<1x64xf32, #tpu.memory_space<vmem>>, %arg16: memref<1x64xf32, #tpu.memory_space<vmem>>, %arg17: memref<1x64xf32, #tpu.memory_space<vmem>>, %arg18: memref<1x64xf32, #tpu.memory_space<vmem>>) attributes {dimension_semantics = [#tpu.dimension_semantics<arbitrary>, #tpu.dimension_semantics<arbitrary>], iteration_bounds = array<i64: 3, 1>, scalar_prefetch = 0 : i64, scratch_operands = 4 : i64, tpu.core_type = #tpu.core_type<tc>, window_params = [{transform_indices = @transform_0, window_bounds = array<i64: 16, 6>}, {transform_indices = @transform_1, window_bounds = array<i64: 16, 64>}, {pipeline_mode = #tpu.pipeline_mode<synchronous>, transform_indices = @transform_2, window_bounds = array<i64: 6, 64>}, {pipeline_mode = #tpu.pipeline_mode<synchronous>, transform_indices = @transform_3, window_bounds = array<i64: 1, 64>}, {pipeline_mode = #tpu.pipeline_mode<synchronous>, transform_indices = @transform_4, window_bounds = array<i64: 1, 64>}, {pipeline_mode = #tpu.pipeline_mode<synchronous>, transform_indices = @transform_5, window_bounds = array<i64: 1, 64>}, {pipeline_mode = #tpu.pipeline_mode<synchronous>, transform_indices = @transform_6, window_bounds = array<i64: 64, 64>}, {pipeline_mode = #tpu.pipeline_mode<synchronous>, transform_indices = @transform_7, window_bounds = array<i64: 1, 64>}, {pipeline_mode = #tpu.pipeline_mode<synchronous>, transform_indices = @transform_8, window_bounds = array<i64: 1, 64>}, {pipeline_mode = #tpu.pipeline_mode<synchronous>, transform_indices = @transform_9, window_bounds = array<i64: 1, 64>}, {pipeline_mode = #tpu.pipeline_mode<synchronous>, transform_indices = @transform_10, window_bounds = array<i64: 1, 64>}, {pipeline_mode = #tpu.pipeline_mode<synchronous>, transform_indices = @transform_11, window_bounds = array<i64: 1, 1>}, {transform_indices = @transform_12, window_bounds = array<i64: 16, 1>}]} {
    %c16_i32 = arith.constant 16 : i32
    %0 = arith.muli %arg1, %c16_i32 : i32
    %1 = tpu.iota {dimensions = array<i32: 0>} : vector<16x1xi32>
    %2 = vector.broadcast %0 : i32 to vector<16x1xi32>
    %3 = arith.addi %2, %1 : vector<16x1xi32>
    %c16_i32_0 = arith.constant 16 : i32
    %4 = vector.broadcast %c16_i32_0 : i32 to vector<16x1xi32>
    %5 = arith.cmpi slt, %3, %4 : vector<16x1xi32>
    %c0 = arith.constant 0 : index
    %c0_1 = arith.constant 0 : index
    %6 = vector.load %arg2[%c0, %c0_1] : memref<16x6xf32, #tpu.memory_space<vmem>>, vector<16x6xf32>
    %c0_2 = arith.constant 0 : index
    %c0_3 = arith.constant 0 : index
    %7 = vector.load %arg4[%c0_2, %c0_3] : memref<6x64xf32, #tpu.memory_space<vmem>>, vector<6x64xf32>
    %cst = arith.constant dense<0.000000e+00> : vector<16x64xf32>
    %8 = tpu.matmul %6, %7, %cst {dimension_numbers = #tpu.dot_dimension_numbers<[1], [0], [0], [1], [0, 0, 1, 1], [], []>} : vector<16x6xf32>, vector<6x64xf32>, vector<16x64xf32> -> vector<16x64xf32>
    %c0_4 = arith.constant 0 : index
    %c0_5 = arith.constant 0 : index
    %9 = vector.load %arg5[%c0_4, %c0_5] : memref<1x64xf32, #tpu.memory_space<vmem>>, vector<1x64xf32>
    %10 = vector.broadcast %9 : vector<1x64xf32> to vector<16x64xf32>
    %11 = arith.addf %8, %10 : vector<16x64xf32>
    %cst_6 = arith.constant 0.000000e+00 : f32
    %12 = vector.broadcast %cst_6 : f32 to vector<16x64xf32>
    %13 = arith.maximumf %11, %12 : vector<16x64xf32>
    %c0_i32 = arith.constant 0 : i32
    %14 = arith.cmpi eq, %arg0, %c0_i32 : i32
    %15 = arith.extui %14 : i1 to i32
    %c0_i32_7 = arith.constant 0 : i32
    %16 = arith.cmpi ne, %15, %c0_i32_7 : i32
    scf.if %16 {
      %c0_i32_10 = arith.constant 0 : i32
      %20 = arith.cmpi eq, %arg1, %c0_i32_10 : i32
      %21 = arith.extui %20 : i1 to i32
      %c0_i32_11 = arith.constant 0 : i32
      %22 = arith.cmpi ne, %21, %c0_i32_11 : i32
      scf.if %22 {
        %cst_23 = arith.constant 0.000000e+00 : f32
        %38 = vector.broadcast %cst_23 : f32 to vector<1x64xf32>
        %c0_24 = arith.constant 0 : index
        %c0_25 = arith.constant 0 : index
        %39 = vector.load %arg15[%c0_24, %c0_25] : memref<1x64xf32, #tpu.memory_space<vmem>>, vector<1x64xf32>
        tpu.vector_store %arg15[%c0_24, %c0_25], %38 {strides = array<i32>} : memref<1x64xf32, #tpu.memory_space<vmem>>, vector<1x64xf32>,
        %cst_26 = arith.constant 0.000000e+00 : f32
        %40 = vector.broadcast %cst_26 : f32 to vector<1x64xf32>
        %c0_27 = arith.constant 0 : index
        %c0_28 = arith.constant 0 : index
        %41 = vector.load %arg16[%c0_27, %c0_28] : memref<1x64xf32, #tpu.memory_space<vmem>>, vector<1x64xf32>
        tpu.vector_store %arg16[%c0_27, %c0_28], %40 {strides = array<i32>} : memref<1x64xf32, #tpu.memory_space<vmem>>, vector<1x64xf32>,
        %cst_29 = arith.constant 0.000000e+00 : f32
        %42 = vector.broadcast %cst_29 : f32 to vector<1x64xf32>
        %c0_30 = arith.constant 0 : index
        %c0_31 = arith.constant 0 : index
        %43 = vector.load %arg17[%c0_30, %c0_31] : memref<1x64xf32, #tpu.memory_space<vmem>>, vector<1x64xf32>
        tpu.vector_store %arg17[%c0_30, %c0_31], %42 {strides = array<i32>} : memref<1x64xf32, #tpu.memory_space<vmem>>, vector<1x64xf32>,
        %cst_32 = arith.constant 0.000000e+00 : f32
        %44 = vector.broadcast %cst_32 : f32 to vector<1x64xf32>
        %c0_33 = arith.constant 0 : index
        %c0_34 = arith.constant 0 : index
        %45 = vector.load %arg18[%c0_33, %c0_34] : memref<1x64xf32, #tpu.memory_space<vmem>>, vector<1x64xf32>
        tpu.vector_store %arg18[%c0_33, %c0_34], %44 {strides = array<i32>} : memref<1x64xf32, #tpu.memory_space<vmem>>, vector<1x64xf32>,
      } else {
      }
      %cst_12 = arith.constant 0.000000e+00 : f32
      %23 = vector.shape_cast %5 : vector<16x1xi1> to vector<16x1xi1>
      %24 = vector.broadcast %23 : vector<16x1xi1> to vector<16x64xi1>
      %25 = vector.broadcast %cst_12 : f32 to vector<16x64xf32>
      %26 = arith.select %24, %13, %25 : vector<16x64xi1>, vector<16x64xf32>
      %c0_13 = arith.constant 0 : index
      %c0_14 = arith.constant 0 : index
      %27 = vector.load %arg15[%c0_13, %c0_14] : memref<1x64xf32, #tpu.memory_space<vmem>>, vector<1x64xf32>
      %cst_15 = arith.constant dense<0.000000e+00> : vector<64xf32>
      %28 = vector.multi_reduction <add>, %26, %cst_15 [0] : vector<16x64xf32> to vector<64xf32>
      %29 = vector.shape_cast %28 : vector<64xf32> to vector<1x64xf32>
      %30 = arith.addf %27, %29 : vector<1x64xf32>
      %c0_16 = arith.constant 0 : index
      %c0_17 = arith.constant 0 : index
      %31 = vector.load %arg15[%c0_16, %c0_17] : memref<1x64xf32, #tpu.memory_space<vmem>>, vector<1x64xf32>
      tpu.vector_store %arg15[%c0_16, %c0_17], %30 {strides = array<i32>} : memref<1x64xf32, #tpu.memory_space<vmem>>, vector<1x64xf32>,
      %c0_18 = arith.constant 0 : index
      %c0_19 = arith.constant 0 : index
      %32 = vector.load %arg16[%c0_18, %c0_19] : memref<1x64xf32, #tpu.memory_space<vmem>>, vector<1x64xf32>
      %33 = arith.mulf %26, %26 : vector<16x64xf32>
      %cst_20 = arith.constant dense<0.000000e+00> : vector<64xf32>
      %34 = vector.multi_reduction <add>, %33, %cst_20 [0] : vector<16x64xf32> to vector<64xf32>
      %35 = vector.shape_cast %34 : vector<64xf32> to vector<1x64xf32>
      %36 = arith.addf %32, %35 : vector<1x64xf32>
      %c0_21 = arith.constant 0 : index
      %c0_22 = arith.constant 0 : index
      %37 = vector.load %arg16[%c0_21, %c0_22] : memref<1x64xf32, #tpu.memory_space<vmem>>, vector<1x64xf32>
      tpu.vector_store %arg16[%c0_21, %c0_22], %36 {strides = array<i32>} : memref<1x64xf32, #tpu.memory_space<vmem>>, vector<1x64xf32>,
    } else {
    }
    %c0_i32_8 = arith.constant 0 : i32
    %17 = arith.cmpi sgt, %arg0, %c0_i32_8 : i32
    %18 = arith.extui %17 : i1 to i32
    %c0_i32_9 = arith.constant 0 : i32
    %19 = arith.cmpi ne, %18, %c0_i32_9 : i32
    scf.if %19 {
      %c0_10 = arith.constant 0 : index
      %c0_11 = arith.constant 0 : index
      %20 = vector.load %arg15[%c0_10, %c0_11] : memref<1x64xf32, #tpu.memory_space<vmem>>, vector<1x64xf32>
      %cst_12 = arith.constant 6.250000e-02 : f32
      %21 = vector.broadcast %cst_12 : f32 to vector<1x64xf32>
      %22 = arith.mulf %20, %21 : vector<1x64xf32>
      %c0_13 = arith.constant 0 : index
      %c0_14 = arith.constant 0 : index
      %23 = vector.load %arg16[%c0_13, %c0_14] : memref<1x64xf32, #tpu.memory_space<vmem>>, vector<1x64xf32>
      %cst_15 = arith.constant 6.250000e-02 : f32
      %24 = vector.broadcast %cst_15 : f32 to vector<1x64xf32>
      %25 = arith.mulf %23, %24 : vector<1x64xf32>
      %26 = arith.mulf %22, %22 : vector<1x64xf32>
      %27 = arith.subf %25, %26 : vector<1x64xf32>
      %28 = vector.broadcast %22 : vector<1x64xf32> to vector<16x64xf32>
      %29 = arith.subf %13, %28 : vector<16x64xf32>
      %cst_16 = arith.constant 9.99999974E-6 : f32
      %30 = vector.broadcast %cst_16 : f32 to vector<1x64xf32>
      %31 = arith.addf %27, %30 : vector<1x64xf32>
      %32 = math.rsqrt %31 : vector<1x64xf32>
      %c0_17 = arith.constant 0 : index
      %c0_18 = arith.constant 0 : index
      %33 = vector.load %arg6[%c0_17, %c0_18] : memref<1x64xf32, #tpu.memory_space<vmem>>, vector<1x64xf32>
      %34 = arith.mulf %32, %33 : vector<1x64xf32>
      %35 = vector.broadcast %34 : vector<1x64xf32> to vector<16x64xf32>
      %36 = arith.mulf %29, %35 : vector<16x64xf32>
      %c0_19 = arith.constant 0 : index
      %c0_20 = arith.constant 0 : index
      %37 = vector.load %arg7[%c0_19, %c0_20] : memref<1x64xf32, #tpu.memory_space<vmem>>, vector<1x64xf32>
      %38 = vector.broadcast %37 : vector<1x64xf32> to vector<16x64xf32>
      %39 = arith.addf %36, %38 : vector<16x64xf32>
      %c0_21 = arith.constant 0 : index
      %c0_22 = arith.constant 0 : index
      %40 = vector.load %arg8[%c0_21, %c0_22] : memref<64x64xf32, #tpu.memory_space<vmem>>, vector<64x64xf32>
      %cst_23 = arith.constant dense<0.000000e+00> : vector<16x64xf32>
      %41 = tpu.matmul %39, %40, %cst_23 {dimension_numbers = #tpu.dot_dimension_numbers<[1], [0], [0], [1], [0, 0, 1, 1], [], []>} : vector<16x64xf32>, vector<64x64xf32>, vector<16x64xf32> -> vector<16x64xf32>
      %c0_24 = arith.constant 0 : index
      %c0_25 = arith.constant 0 : index
      %42 = vector.load %arg9[%c0_24, %c0_25] : memref<1x64xf32, #tpu.memory_space<vmem>>, vector<1x64xf32>
      %43 = vector.broadcast %42 : vector<1x64xf32> to vector<16x64xf32>
      %44 = arith.addf %41, %43 : vector<16x64xf32>
      %cst_26 = arith.constant 0.000000e+00 : f32
      %45 = vector.broadcast %cst_26 : f32 to vector<16x64xf32>
      %46 = arith.maximumf %44, %45 : vector<16x64xf32>
      %c1_i32 = arith.constant 1 : i32
      %47 = arith.cmpi eq, %arg0, %c1_i32 : i32
      %48 = arith.extui %47 : i1 to i32
      %c0_i32_27 = arith.constant 0 : i32
      %49 = arith.cmpi ne, %48, %c0_i32_27 : i32
      scf.if %49 {
        %cst_29 = arith.constant 0.000000e+00 : f32
        %53 = vector.shape_cast %5 : vector<16x1xi1> to vector<16x1xi1>
        %54 = vector.broadcast %53 : vector<16x1xi1> to vector<16x64xi1>
        %55 = vector.broadcast %cst_29 : f32 to vector<16x64xf32>
        %56 = arith.select %54, %46, %55 : vector<16x64xi1>, vector<16x64xf32>
        %c0_30 = arith.constant 0 : index
        %c0_31 = arith.constant 0 : index
        %57 = vector.load %arg17[%c0_30, %c0_31] : memref<1x64xf32, #tpu.memory_space<vmem>>, vector<1x64xf32>
        %cst_32 = arith.constant dense<0.000000e+00> : vector<64xf32>
        %58 = vector.multi_reduction <add>, %56, %cst_32 [0] : vector<16x64xf32> to vector<64xf32>
        %59 = vector.shape_cast %58 : vector<64xf32> to vector<1x64xf32>
        %60 = arith.addf %57, %59 : vector<1x64xf32>
        %c0_33 = arith.constant 0 : index
        %c0_34 = arith.constant 0 : index
        %61 = vector.load %arg17[%c0_33, %c0_34] : memref<1x64xf32, #tpu.memory_space<vmem>>, vector<1x64xf32>
        tpu.vector_store %arg17[%c0_33, %c0_34], %60 {strides = array<i32>} : memref<1x64xf32, #tpu.memory_space<vmem>>, vector<1x64xf32>,
        %c0_35 = arith.constant 0 : index
        %c0_36 = arith.constant 0 : index
        %62 = vector.load %arg18[%c0_35, %c0_36] : memref<1x64xf32, #tpu.memory_space<vmem>>, vector<1x64xf32>
        %63 = arith.mulf %56, %56 : vector<16x64xf32>
        %cst_37 = arith.constant dense<0.000000e+00> : vector<64xf32>
        %64 = vector.multi_reduction <add>, %63, %cst_37 [0] : vector<16x64xf32> to vector<64xf32>
        %65 = vector.shape_cast %64 : vector<64xf32> to vector<1x64xf32>
        %66 = arith.addf %62, %65 : vector<1x64xf32>
        %c0_38 = arith.constant 0 : index
        %c0_39 = arith.constant 0 : index
        %67 = vector.load %arg18[%c0_38, %c0_39] : memref<1x64xf32, #tpu.memory_space<vmem>>, vector<1x64xf32>
        tpu.vector_store %arg18[%c0_38, %c0_39], %66 {strides = array<i32>} : memref<1x64xf32, #tpu.memory_space<vmem>>, vector<1x64xf32>,
      } else {
      }
      %c2_i32 = arith.constant 2 : i32
      %50 = arith.cmpi eq, %arg0, %c2_i32 : i32
      %51 = arith.extui %50 : i1 to i32
      %c0_i32_28 = arith.constant 0 : i32
      %52 = arith.cmpi ne, %51, %c0_i32_28 : i32
      scf.if %52 {
        %c0_29 = arith.constant 0 : index
        %c0_30 = arith.constant 0 : index
        %53 = vector.load %arg17[%c0_29, %c0_30] : memref<1x64xf32, #tpu.memory_space<vmem>>, vector<1x64xf32>
        %cst_31 = arith.constant 6.250000e-02 : f32
        %54 = vector.broadcast %cst_31 : f32 to vector<1x64xf32>
        %55 = arith.mulf %53, %54 : vector<1x64xf32>
        %c0_32 = arith.constant 0 : index
        %c0_33 = arith.constant 0 : index
        %56 = vector.load %arg18[%c0_32, %c0_33] : memref<1x64xf32, #tpu.memory_space<vmem>>, vector<1x64xf32>
        %cst_34 = arith.constant 6.250000e-02 : f32
        %57 = vector.broadcast %cst_34 : f32 to vector<1x64xf32>
        %58 = arith.mulf %56, %57 : vector<1x64xf32>
        %59 = arith.mulf %55, %55 : vector<1x64xf32>
        %60 = arith.subf %58, %59 : vector<1x64xf32>
        %61 = vector.broadcast %55 : vector<1x64xf32> to vector<16x64xf32>
        %62 = arith.subf %46, %61 : vector<16x64xf32>
        %cst_35 = arith.constant 9.99999974E-6 : f32
        %63 = vector.broadcast %cst_35 : f32 to vector<1x64xf32>
        %64 = arith.addf %60, %63 : vector<1x64xf32>
        %65 = math.rsqrt %64 : vector<1x64xf32>
        %c0_36 = arith.constant 0 : index
        %c0_37 = arith.constant 0 : index
        %66 = vector.load %arg10[%c0_36, %c0_37] : memref<1x64xf32, #tpu.memory_space<vmem>>, vector<1x64xf32>
        %67 = arith.mulf %65, %66 : vector<1x64xf32>
        %68 = vector.broadcast %67 : vector<1x64xf32> to vector<16x64xf32>
        %69 = arith.mulf %62, %68 : vector<16x64xf32>
        %c0_38 = arith.constant 0 : index
        %c0_39 = arith.constant 0 : index
        %70 = vector.load %arg11[%c0_38, %c0_39] : memref<1x64xf32, #tpu.memory_space<vmem>>, vector<1x64xf32>
        %71 = vector.broadcast %70 : vector<1x64xf32> to vector<16x64xf32>
        %72 = arith.addf %69, %71 : vector<16x64xf32>
        %c0_40 = arith.constant 0 : index
        %c0_41 = arith.constant 0 : index
        %73 = vector.load %arg3[%c0_40, %c0_41] : memref<16x64xf32, #tpu.memory_space<vmem>>, vector<16x64xf32>
        %74 = arith.mulf %72, %73 : vector<16x64xf32>
        %c0_42 = arith.constant 0 : index
        %c0_43 = arith.constant 0 : index
        %75 = vector.load %arg12[%c0_42, %c0_43] : memref<1x64xf32, #tpu.memory_space<vmem>>, vector<1x64xf32>
        %76 = vector.broadcast %75 : vector<1x64xf32> to vector<16x64xf32>
        %77 = arith.mulf %74, %76 : vector<16x64xf32>
        %cst_44 = arith.constant dense<0.000000e+00> : vector<16xf32>
        %78 = vector.multi_reduction <add>, %77, %cst_44 [1] : vector<16x64xf32> to vector<16xf32>
        %79 = vector.shape_cast %78 : vector<16xf32> to vector<16x1xf32>
        %c0_45 = arith.constant 0 : index
        %c0_46 = arith.constant 0 : index
        %80 = vector.load %arg13[%c0_45, %c0_46] : memref<1x1xf32, #tpu.memory_space<vmem>>, vector<1x1xf32>
        %81 = vector.broadcast %80 : vector<1x1xf32> to vector<16x1xf32>
        %82 = arith.addf %79, %81 : vector<16x1xf32>
        %c0_47 = arith.constant 0 : index
        %c0_48 = arith.constant 0 : index
        %83 = vector.load %arg14[%c0_47, %c0_48] : memref<16x1xf32, #tpu.memory_space<vmem>>, vector<16x1xf32>
        tpu.vector_store %arg14[%c0_47, %c0_48], %82 {strides = array<i32>} : memref<16x1xf32, #tpu.memory_space<vmem>>, vector<16x1xf32>,
      } else {
      }
    } else {
    }
    return
  }
  func.func @transform_0(%arg0: i32, %arg1: i32) -> (i32, i32) {
    %c0_i32 = arith.constant 0 : i32
    %c0_i32_0 = arith.constant 0 : i32
    return %arg1, %c0_i32 : i32, i32
  }
  func.func @transform_1(%arg0: i32, %arg1: i32) -> (i32, i32) {
    %c0_i32 = arith.constant 0 : i32
    %c0_i32_0 = arith.constant 0 : i32
    return %arg1, %c0_i32 : i32, i32
  }
  func.func @transform_2(%arg0: i32, %arg1: i32) -> (i32, i32) {
    %c0_i32 = arith.constant 0 : i32
    %c0_i32_0 = arith.constant 0 : i32
    %c0_i32_1 = arith.constant 0 : i32
    return %c0_i32, %c0_i32_0 : i32, i32
  }
  func.func @transform_3(%arg0: i32, %arg1: i32) -> (i32, i32) {
    %c0_i32 = arith.constant 0 : i32
    %c0_i32_0 = arith.constant 0 : i32
    %c0_i32_1 = arith.constant 0 : i32
    return %c0_i32, %c0_i32_0 : i32, i32
  }
  func.func @transform_4(%arg0: i32, %arg1: i32) -> (i32, i32) {
    %c0_i32 = arith.constant 0 : i32
    %c0_i32_0 = arith.constant 0 : i32
    %c0_i32_1 = arith.constant 0 : i32
    return %c0_i32, %c0_i32_0 : i32, i32
  }
  func.func @transform_5(%arg0: i32, %arg1: i32) -> (i32, i32) {
    %c0_i32 = arith.constant 0 : i32
    %c0_i32_0 = arith.constant 0 : i32
    %c0_i32_1 = arith.constant 0 : i32
    return %c0_i32, %c0_i32_0 : i32, i32
  }
  func.func @transform_6(%arg0: i32, %arg1: i32) -> (i32, i32) {
    %c0_i32 = arith.constant 0 : i32
    %c0_i32_0 = arith.constant 0 : i32
    %c0_i32_1 = arith.constant 0 : i32
    return %c0_i32, %c0_i32_0 : i32, i32
  }
  func.func @transform_7(%arg0: i32, %arg1: i32) -> (i32, i32) {
    %c0_i32 = arith.constant 0 : i32
    %c0_i32_0 = arith.constant 0 : i32
    %c0_i32_1 = arith.constant 0 : i32
    return %c0_i32, %c0_i32_0 : i32, i32
  }
  func.func @transform_8(%arg0: i32, %arg1: i32) -> (i32, i32) {
    %c0_i32 = arith.constant 0 : i32
    %c0_i32_0 = arith.constant 0 : i32
    %c0_i32_1 = arith.constant 0 : i32
    return %c0_i32, %c0_i32_0 : i32, i32
  }
  func.func @transform_9(%arg0: i32, %arg1: i32) -> (i32, i32) {
    %c0_i32 = arith.constant 0 : i32
    %c0_i32_0 = arith.constant 0 : i32
    %c0_i32_1 = arith.constant 0 : i32
    return %c0_i32, %c0_i32_0 : i32, i32
  }
  func.func @transform_10(%arg0: i32, %arg1: i32) -> (i32, i32) {
    %c0_i32 = arith.constant 0 : i32
    %c0_i32_0 = arith.constant 0 : i32
    %c0_i32_1 = arith.constant 0 : i32
    return %c0_i32, %c0_i32_0 : i32, i32
  }
  func.func @transform_11(%arg0: i32, %arg1: i32) -> (i32, i32) {
    %c0_i32 = arith.constant 0 : i32
    %c0_i32_0 = arith.constant 0 : i32
    %c0_i32_1 = arith.constant 0 : i32
    return %c0_i32, %c0_i32_0 : i32, i32
  }
  func.func @transform_12(%arg0: i32, %arg1: i32) -> (i32, i32) {
    %c0_i32 = arith.constant 0 : i32
    %c0_i32_0 = arith.constant 0 : i32
    return %arg1, %c0_i32 : i32, i32
  }
}

</mosaic_0001>

<llo_original>
// kernel: tpu_custom_call.1
$region0: #{tpu_custom_call.1}
  #allocation0 [shape = 'u32[]', space=smem, size = 0x4, offset = 0x4, fixed_abs, tag = 'smem constant byte address 0x4 - core index']
  #allocation1 [shape = 'u32[144,128]{1,0:T(1,128)}', space=vmem, size = 0x12000, scoped, tag = 'internal scratch']
  #allocation2 [shape = 'f32[1,64]{1,0:T(1,128)}', space=vmem, size = 0x200, scoped, tag = 'scratch operand']
  #allocation3 [shape = 'f32[1,64]{1,0:T(1,128)}', space=vmem, size = 0x200, scoped, tag = 'scratch operand']
  #allocation4 [shape = 'f32[1,64]{1,0:T(1,128)}', space=vmem, size = 0x200, scoped, tag = 'scratch operand']
  #allocation5 [shape = 'f32[1,64]{1,0:T(1,128)}', space=vmem, size = 0x200, scoped, tag = 'scratch operand']
  #allocation6 [shape = 'f32[1,1]{1,0:T(1,128)S(1)}', space=vmem, size = 0x200, scoped, tag = 'scoped memory for tpu_custom_call.1']
  %s0 = inlined_call_operand.vmem [shape: f32[16,6], index: 0, kind: input, shape index: {}]
  %s1 = inlined_call_operand.vmem [shape: f32[16,64], index: 1, kind: input, shape index: {}]
  %s2 = inlined_call_operand.vmem [shape: f32[6,64], index: 2, kind: input, shape index: {}]
  %s3 = inlined_call_operand.vmem [shape: f32[1,64], index: 3, kind: input, shape index: {}]
  %s4 = inlined_call_operand.vmem [shape: f32[1,64], index: 4, kind: input, shape index: {}]
  %s5 = inlined_call_operand.vmem [shape: f32[1,64], index: 5, kind: input, shape index: {}]
  %s6 = inlined_call_operand.hbm [shape: f32[64,64], index: 6, kind: input, shape index: {}]
  %s7 = inlined_call_operand.vmem [shape: f32[1,64], index: 7, kind: input, shape index: {}]
  %s8 = inlined_call_operand.vmem [shape: f32[1,64], index: 8, kind: input, shape index: {}]
  %s9 = inlined_call_operand.vmem [shape: f32[1,64], index: 9, kind: input, shape index: {}]
  %s10 = inlined_call_operand.vmem [shape: f32[1,64], index: 10, kind: input, shape index: {}]
  %s11 = inlined_call_operand.<no memory space> [shape: f32[1,1], index: 11, kind: input, shape index: {}]
  %s12 = inlined_call_operand.vmem [shape: f32[16,1], index: 12, kind: output, shape index: {}]
  %s13 = sld [smem:[#allocation0]]
  $region105: #{tpu_custom_call.1} parent=0
    _
  %s15 = ssub.s32 1, %s13
  %s16 = scalar_select 0, %s15, %s13
  %v17 = vstv %s11
  %18 = vst [vmem:[#allocation6] sm:$0x1] %v17
  $region1: #{tpu_custom_call.1} parent=0
    #allocation7 [shape = 'u8[32768]{0}', space=vmem, size = 0x8000, scoped, tag = 'input window, operand 6, single buffered']
    #allocation8 [shape = 's32[2]{0}', space=sflag, size = 0x8, scoped, tag = 'scoped memory for tpu_custom_call.1']
    %19 = vsyncpa [#allocation8], 0
    loop: start=0, step=1, limit=5
    $region2: #{tpu_custom_call.1} parent=1 // loop_pre_header
      _
    $region3: #{tpu_custom_call.1} parent=1 // loop_header
      %s21 = sphi 0, %s25
      %p22 = scmp.ge.s32.totalorder %s21, 5
      %s28 = sphi 0, %s40
      %s29 = sphi 0, %s36
      %s30 = sphi 0, %s28
      %s31 = sphi 0, %s29
      %s32 = sphi 0, %s30
      %s33 = sphi 0, %s31
      %s43 = sphi 0, %s45
      %s46 = sphi 0, %s43
      %s47 = sphi 0, %s46
      %s63 = sphi 0, %s47
      %s69 = sphi 0, %s71
      %s72 = sphi 0, %s69
      %s73 = sphi 0, %s72
      %s89 = sphi 0, %s73
      %s93 = sphi 0, %s93
      %s95 = sphi 0, %s93
      %s96 = sphi 0, %s95
      %s110 = sphi 0, %s96
      %s114 = sphi 0, %s114
      %s116 = sphi 0, %s114
      %s117 = sphi 0, %s116
      %s131 = sphi 0, %s117
      %s135 = sphi 0, %s135
      %s137 = sphi 0, %s135
      %s138 = sphi 0, %s137
      %s152 = sphi 0, %s138
      %s156 = sphi 0, %s156
      %s158 = sphi 0, %s156
      %s159 = sphi 0, %s158
      %s173 = sphi 0, %s159
      %s177 = sphi 0, %s177
      %s179 = sphi 0, %s177
      %s180 = sphi 0, %s179
      %s194 = sphi 0, %s180
      %s198 = sphi 0, %s198
      %s200 = sphi 0, %s198
      %s201 = sphi 0, %s200
      %s215 = sphi 0, %s201
      %s219 = sphi 0, %s219
      %s221 = sphi 0, %s219
      %s222 = sphi 0, %s221
      %s236 = sphi 0, %s222
      %s240 = sphi 0, %s240
      %s242 = sphi 0, %s240
      %s243 = sphi 0, %s242
      %s257 = sphi 0, %s243
      %s261 = sphi 0, %s261
      %s263 = sphi 0, %s261
      %s264 = sphi 0, %s263
      %s278 = sphi 0, %s264
      %s282 = sphi 0, %s282
      %s284 = sphi 0, %s282
      %s285 = sphi 0, %s284
      %s299 = sphi 0, %s285
      %s305 = sphi 0, %s307
      %s308 = sphi 0, %s305
      %s309 = sphi 0, %s308
      %s325 = sphi 0, %s309
    $region4: #{tpu_custom_call.1} parent=1 // loop_header_branch
      %24 = sbr.rel (%p22) target = $region8
    $region5: #{tpu_custom_call.1} parent=1 // loop_body
      %s26 = ssub.s32 %s21, 1
      %s27 = ssub.s32 %s21, 2
      %s34 = sadd.s32 1, %s29
      %p35 = scmp.ge.s32.totalorder %s34, 1
      %s36 = scalar_select %p35, 0, %s34
      %s37 = sadd.s32 1, %s28
      %s38 = scalar_select %p35, %s37, %s28
      %p39 = scmp.ge.s32.totalorder %s38, 3
      %s40 = scalar_select %p39, 0, %s38
      %s41 = ssub.s32 %s29, %s36
      %p42 = scmp.eq.s32.totalorder %s41, 0
      %s44 = sadd.s32 %s43, 1
      %s45 = scalar_select %p42, %s43, %s44
      %p48 = pneg %p42
      %p49 = scmp.eq.s32.totalorder %s21, 2
      %p50 = por %p48, %p49
      %p51 = scmp.ne.s32.totalorder %s43, %s46
      %p52 = scmp.eq.s32.totalorder %s21, 0
      %p53 = por %p51, %p52
      %p54 = scmp.ne.s32.totalorder %s43, %s46
      %p55 = scmp.eq.s32.totalorder %s26, 2
      %p56 = por %p54, %p55
      %p57 = scmp.ne.s32.totalorder %s46, %s47
      %p58 = scmp.eq.s32.totalorder %s26, 0
      %p59 = por %p57, %p58
      %p60 = scmp.ne.s32.totalorder %s46, %s47
      %p61 = scmp.eq.s32.totalorder %s27, 2
      %p62 = por %p60, %p61
      %p64 = scmp.ne.s32.totalorder %s47, %s63
      %p65 = scmp.eq.s32.totalorder %s27, 0
      %p66 = por %p64, %p65
      %s67 = ssub.s32 %s29, %s36
      %p68 = scmp.eq.s32.totalorder %s67, 0
      %s70 = sadd.s32 %s69, 1
      %s71 = scalar_select %p68, %s69, %s70
      %p74 = pneg %p68
      %p75 = scmp.eq.s32.totalorder %s21, 2
      %p76 = por %p74, %p75
      %p77 = scmp.ne.s32.totalorder %s69, %s72
      %p78 = scmp.eq.s32.totalorder %s21, 0
      %p79 = por %p77, %p78
      %p80 = scmp.ne.s32.totalorder %s69, %s72
      %p81 = scmp.eq.s32.totalorder %s26, 2
      %p82 = por %p80, %p81
      %p83 = scmp.ne.s32.totalorder %s72, %s73
      %p84 = scmp.eq.s32.totalorder %s26, 0
      %p85 = por %p83, %p84
      %p86 = scmp.ne.s32.totalorder %s72, %s73
      %p87 = scmp.eq.s32.totalorder %s27, 2
      %p88 = por %p86, %p87
      %p90 = scmp.ne.s32.totalorder %s73, %s89
      %p91 = scmp.eq.s32.totalorder %s27, 0
      %p92 = por %p90, %p91
      %s94 = sadd.s32 %s93, 1
      %p97 = scmp.eq.s32.totalorder %s21, 2
      %p98 = scmp.ne.s32.totalorder %s93, %s95
      %p99 = scmp.eq.s32.totalorder %s21, 0
      %p100 = por %p98, %p99
      %p101 = scmp.ne.s32.totalorder %s93, %s95
      %p102 = scmp.eq.s32.totalorder %s26, 2
      %p103 = por %p101, %p102
      %p104 = scmp.ne.s32.totalorder %s95, %s96
      %p105 = scmp.eq.s32.totalorder %s26, 0
      %p106 = por %p104, %p105
      %p107 = scmp.ne.s32.totalorder %s95, %s96
      %p108 = scmp.eq.s32.totalorder %s27, 2
      %p109 = por %p107, %p108
      %p111 = scmp.ne.s32.totalorder %s96, %s110
      %p112 = scmp.eq.s32.totalorder %s27, 0
      %p113 = por %p111, %p112
      %s115 = sadd.s32 %s114, 1
      %p118 = scmp.eq.s32.totalorder %s21, 2
      %p119 = scmp.ne.s32.totalorder %s114, %s116
      %p120 = scmp.eq.s32.totalorder %s21, 0
      %p121 = por %p119, %p120
      %p122 = scmp.ne.s32.totalorder %s114, %s116
      %p123 = scmp.eq.s32.totalorder %s26, 2
      %p124 = por %p122, %p123
      %p125 = scmp.ne.s32.totalorder %s116, %s117
      %p126 = scmp.eq.s32.totalorder %s26, 0
      %p127 = por %p125, %p126
      %p128 = scmp.ne.s32.totalorder %s116, %s117
      %p129 = scmp.eq.s32.totalorder %s27, 2
      %p130 = por %p128, %p129
      %p132 = scmp.ne.s32.totalorder %s117, %s131
      %p133 = scmp.eq.s32.totalorder %s27, 0
      %p134 = por %p132, %p133
      %s136 = sadd.s32 %s135, 1
      %p139 = scmp.eq.s32.totalorder %s21, 2
      %p140 = scmp.ne.s32.totalorder %s135, %s137
      %p141 = scmp.eq.s32.totalorder %s21, 0
      %p142 = por %p140, %p141
      %p143 = scmp.ne.s32.totalorder %s135, %s137
      %p144 = scmp.eq.s32.totalorder %s26, 2
      %p145 = por %p143, %p144
      %p146 = scmp.ne.s32.totalorder %s137, %s138
      %p147 = scmp.eq.s32.totalorder %s26, 0
      %p148 = por %p146, %p147
      %p149 = scmp.ne.s32.totalorder %s137, %s138
      %p150 = scmp.eq.s32.totalorder %s27, 2
      %p151 = por %p149, %p150
      %p153 = scmp.ne.s32.totalorder %s138, %s152
      %p154 = scmp.eq.s32.totalorder %s27, 0
      %p155 = por %p153, %p154
      %s157 = sadd.s32 %s156, 1
      %p160 = scmp.eq.s32.totalorder %s21, 2
      %p161 = scmp.ne.s32.totalorder %s156, %s158
      %p162 = scmp.eq.s32.totalorder %s21, 0
      %p163 = por %p161, %p162
      %p164 = scmp.ne.s32.totalorder %s156, %s158
      %p165 = scmp.eq.s32.totalorder %s26, 2
      %p166 = por %p164, %p165
      %p167 = scmp.ne.s32.totalorder %s158, %s159
      %p168 = scmp.eq.s32.totalorder %s26, 0
      %p169 = por %p167, %p168
      %p170 = scmp.ne.s32.totalorder %s158, %s159
      %p171 = scmp.eq.s32.totalorder %s27, 2
      %p172 = por %p170, %p171
      %p174 = scmp.ne.s32.totalorder %s159, %s173
      %p175 = scmp.eq.s32.totalorder %s27, 0
      %p176 = por %p174, %p175
      %s178 = sadd.s32 %s177, 1
      %p181 = scmp.eq.s32.totalorder %s21, 2
      %p182 = scmp.ne.s32.totalorder %s177, %s179
      %p183 = scmp.eq.s32.totalorder %s21, 0
      %p184 = por %p182, %p183
      %p185 = scmp.ne.s32.totalorder %s177, %s179
      %p186 = scmp.eq.s32.totalorder %s26, 2
      %p187 = por %p185, %p186
      %p188 = scmp.ne.s32.totalorder %s179, %s180
      %p189 = scmp.eq.s32.totalorder %s26, 0
      %p190 = por %p188, %p189
      %p191 = scmp.ne.s32.totalorder %s179, %s180
      %p192 = scmp.eq.s32.totalorder %s27, 2
      %p193 = por %p191, %p192
      %p195 = scmp.ne.s32.totalorder %s180, %s194
      %p196 = scmp.eq.s32.totalorder %s27, 0
      %p197 = por %p195, %p196
      %s199 = sadd.s32 %s198, 1
      %p202 = scmp.eq.s32.totalorder %s21, 2
      %p203 = scmp.ne.s32.totalorder %s198, %s200
      %p204 = scmp.eq.s32.totalorder %s21, 0
      %p205 = por %p203, %p204
      %p206 = scmp.ne.s32.totalorder %s198, %s200
      %p207 = scmp.eq.s32.totalorder %s26, 2
      %p208 = por %p206, %p207
      %p209 = scmp.ne.s32.totalorder %s200, %s201
      %p210 = scmp.eq.s32.totalorder %s26, 0
      %p211 = por %p209, %p210
      %p212 = scmp.ne.s32.totalorder %s200, %s201
      %p213 = scmp.eq.s32.totalorder %s27, 2
      %p214 = por %p212, %p213
      %p216 = scmp.ne.s32.totalorder %s201, %s215
      %p217 = scmp.eq.s32.totalorder %s27, 0
      %p218 = por %p216, %p217
      %s220 = sadd.s32 %s219, 1
      %p223 = scmp.eq.s32.totalorder %s21, 2
      %p224 = scmp.ne.s32.totalorder %s219, %s221
      %p225 = scmp.eq.s32.totalorder %s21, 0
      %p226 = por %p224, %p225
      %p227 = scmp.ne.s32.totalorder %s219, %s221
      %p228 = scmp.eq.s32.totalorder %s26, 2
      %p229 = por %p227, %p228
      %p230 = scmp.ne.s32.totalorder %s221, %s222
      %p231 = scmp.eq.s32.totalorder %s26, 0
      %p232 = por %p230, %p231
      %p233 = scmp.ne.s32.totalorder %s221, %s222
      %p234 = scmp.eq.s32.totalorder %s27, 2
      %p235 = por %p233, %p234
      %p237 = scmp.ne.s32.totalorder %s222, %s236
      %p238 = scmp.eq.s32.totalorder %s27, 0
      %p239 = por %p237, %p238
      %s241 = sadd.s32 %s240, 1
      %p244 = scmp.eq.s32.totalorder %s21, 2
      %p245 = scmp.ne.s32.totalorder %s240, %s242
      %p246 = scmp.eq.s32.totalorder %s21, 0
      %p247 = por %p245, %p246
      %p248 = scmp.ne.s32.totalorder %s240, %s242
      %p249 = scmp.eq.s32.totalorder %s26, 2
      %p250 = por %p248, %p249
      %p251 = scmp.ne.s32.totalorder %s242, %s243
      %p252 = scmp.eq.s32.totalorder %s26, 0
      %p253 = por %p251, %p252
      %p254 = scmp.ne.s32.totalorder %s242, %s243
      %p255 = scmp.eq.s32.totalorder %s27, 2
      %p256 = por %p254, %p255
      %p258 = scmp.ne.s32.totalorder %s243, %s257
      %p259 = scmp.eq.s32.totalorder %s27, 0
      %p260 = por %p258, %p259
      %s262 = sadd.s32 %s261, 1
      %p265 = scmp.eq.s32.totalorder %s21, 2
      %p266 = scmp.ne.s32.totalorder %s261, %s263
      %p267 = scmp.eq.s32.totalorder %s21, 0
      %p268 = por %p266, %p267
      %p269 = scmp.ne.s32.totalorder %s261, %s263
      %p270 = scmp.eq.s32.totalorder %s26, 2
      %p271 = por %p269, %p270
      %p272 = scmp.ne.s32.totalorder %s263, %s264
      %p273 = scmp.eq.s32.totalorder %s26, 0
      %p274 = por %p272, %p273
      %p275 = scmp.ne.s32.totalorder %s263, %s264
      %p276 = scmp.eq.s32.totalorder %s27, 2
      %p277 = por %p275, %p276
      %p279 = scmp.ne.s32.totalorder %s264, %s278
      %p280 = scmp.eq.s32.totalorder %s27, 0
      %p281 = por %p279, %p280
      %s283 = sadd.s32 %s282, 1
      %p286 = scmp.eq.s32.totalorder %s21, 2
      %p287 = scmp.ne.s32.totalorder %s282, %s284
      %p288 = scmp.eq.s32.totalorder %s21, 0
      %p289 = por %p287, %p288
      %p290 = scmp.ne.s32.totalorder %s282, %s284
      %p291 = scmp.eq.s32.totalorder %s26, 2
      %p292 = por %p290, %p291
      %p293 = scmp.ne.s32.totalorder %s284, %s285
      %p294 = scmp.eq.s32.totalorder %s26, 0
      %p295 = por %p293, %p294
      %p296 = scmp.ne.s32.totalorder %s284, %s285
      %p297 = scmp.eq.s32.totalorder %s27, 2
      %p298 = por %p296, %p297
      %p300 = scmp.ne.s32.totalorder %s285, %s299
      %p301 = scmp.eq.s32.totalorder %s27, 0
      %p302 = por %p300, %p301
      %s303 = ssub.s32 %s29, %s36
      %p304 = scmp.eq.s32.totalorder %s303, 0
      %s306 = sadd.s32 %s305, 1
      %s307 = scalar_select %p304, %s305, %s306
      %p310 = pneg %p304
      %p311 = scmp.eq.s32.totalorder %s21, 2
      %p312 = por %p310, %p311
      %p313 = scmp.ne.s32.totalorder %s305, %s308
      %p314 = scmp.eq.s32.totalorder %s21, 0
      %p315 = por %p313, %p314
      %p316 = scmp.ne.s32.totalorder %s305, %s308
      %p317 = scmp.eq.s32.totalorder %s26, 2
      %p318 = por %p316, %p317
      %p319 = scmp.ne.s32.totalorder %s308, %s309
      %p320 = scmp.eq.s32.totalorder %s26, 0
      %p321 = por %p319, %p320
      %p322 = scmp.ne.s32.totalorder %s308, %s309
      %p323 = scmp.eq.s32.totalorder %s27, 2
      %p324 = por %p322, %p323
      %p326 = scmp.ne.s32.totalorder %s309, %s325
      %p327 = scmp.eq.s32.totalorder %s27, 0
      %p328 = por %p326, %p327
      %p329 = scmp.le.s32.totalorder 1, %s21
      %p330 = scmp.lt.s32.totalorder %s21, 4
      %p331 = pnand %p329, %p330
      %p332 = pneg %p331
      // Predicated region
      $region9: #{tpu_custom_call.1} parent=5 // pred_check
        _
      $region10: #{tpu_custom_call.1} parent=5 // pred_check_branch
        %334 = sbr.rel (%p331) target = $region12
      $region11: #{tpu_custom_call.1} parent=5 // pred_region
        %s335 = ssub.s32 %s21, 1
        // Predicated region
        $region13: #{tpu_custom_call.1} parent=11 // pred_check
          %p336 = pneg %p59
        $region14: #{tpu_custom_call.1} parent=11 // pred_check_branch
          %338 = sbr.rel (%p336) target = $region16
        $region15: #{tpu_custom_call.1} parent=11 // pred_region
          %s339 = smul.u32 2, %s31
          %p340 = scmp.lt.s32.totalorder %s339, 1
          %s341 = scalar_select %p340, %s339, 1
          %s342 = smul.addr %s341, 8
          %s343 = scalar_lea.vmem %s0, %s342
          %s344 = smul.u32 2, %s31
        $region16: #{tpu_custom_call.1} parent=11 // pred_fallthru
          _
        // Predicated region
        $region17: #{tpu_custom_call.1} parent=11 // pred_check
          %p345 = pneg %p85
        $region18: #{tpu_custom_call.1} parent=11 // pred_check_branch
          %347 = sbr.rel (%p345) target = $region20
        $region19: #{tpu_custom_call.1} parent=11 // pred_region
          %s348 = smul.u32 2, %s31
          %p349 = scmp.lt.s32.totalorder %s348, 1
          %s350 = scalar_select %p349, %s348, 1
          %s351 = smul.addr %s350, 8
          %s352 = scalar_lea.vmem %s1, %s351
          %s353 = smul.u32 2, %s31
        $region20: #{tpu_custom_call.1} parent=11 // pred_fallthru
          _
        // Predicated region
        $region21: #{tpu_custom_call.1} parent=11 // pred_check
          %p354 = pneg %p106
        $region22: #{tpu_custom_call.1} parent=11 // pred_check_branch
          %356 = sbr.rel (%p354) target = $region24
        $region23: #{tpu_custom_call.1} parent=11 // pred_region
          _
        $region24: #{tpu_custom_call.1} parent=11 // pred_fallthru
          _
        // Predicated region
        $region25: #{tpu_custom_call.1} parent=11 // pred_check
          %p357 = pneg %p127
        $region26: #{tpu_custom_call.1} parent=11 // pred_check_branch
          %359 = sbr.rel (%p357) target = $region28
        $region27: #{tpu_custom_call.1} parent=11 // pred_region
          _
        $region28: #{tpu_custom_call.1} parent=11 // pred_fallthru
          _
        // Predicated region
        $region29: #{tpu_custom_call.1} parent=11 // pred_check
          %p360 = pneg %p148
        $region30: #{tpu_custom_call.1} parent=11 // pred_check_branch
          %362 = sbr.rel (%p360) target = $region32
        $region31: #{tpu_custom_call.1} parent=11 // pred_region
          _
        $region32: #{tpu_custom_call.1} parent=11 // pred_fallthru
          _
        // Predicated region
        $region33: #{tpu_custom_call.1} parent=11 // pred_check
          %p363 = pneg %p169
        $region34: #{tpu_custom_call.1} parent=11 // pred_check_branch
          %365 = sbr.rel (%p363) target = $region36
        $region35: #{tpu_custom_call.1} parent=11 // pred_region
          _
        $region36: #{tpu_custom_call.1} parent=11 // pred_fallthru
          _
        // Predicated region
        $region37: #{tpu_custom_call.1} parent=11 // pred_check
          %p366 = pneg %p190
        $region38: #{tpu_custom_call.1} parent=11 // pred_check_branch
          %368 = sbr.rel (%p366) target = $region40
        $region39: #{tpu_custom_call.1} parent=11 // pred_region
          %s370 = ssub.s32 1024, 1024
          %371 = vsyncadd [#allocation8], %s370
          %s372 = sshll.u32 [#allocation7], 4
          %s373 = int_to_ptr.vmem [resolvable:$true] %s372
          %378 = dma.hbm_to_vmem [thread:$0]  %s6, 1024, %s373, [#allocation8], 128, 128, 8
        $region40: #{tpu_custom_call.1} parent=11 // pred_fallthru
          _
        // Predicated region
        $region41: #{tpu_custom_call.1} parent=11 // pred_check
          %p379 = pneg %p211
        $region42: #{tpu_custom_call.1} parent=11 // pred_check_branch
          %381 = sbr.rel (%p379) target = $region44
        $region43: #{tpu_custom_call.1} parent=11 // pred_region
          _
        $region44: #{tpu_custom_call.1} parent=11 // pred_fallthru
          _
        // Predicated region
        $region45: #{tpu_custom_call.1} parent=11 // pred_check
          %p382 = pneg %p232
        $region46: #{tpu_custom_call.1} parent=11 // pred_check_branch
          %384 = sbr.rel (%p382) target = $region48
        $region47: #{tpu_custom_call.1} parent=11 // pred_region
          _
        $region48: #{tpu_custom_call.1} parent=11 // pred_fallthru
          _
        // Predicated region
        $region49: #{tpu_custom_call.1} parent=11 // pred_check
          %p385 = pneg %p253
        $region50: #{tpu_custom_call.1} parent=11 // pred_check_branch
          %387 = sbr.rel (%p385) target = $region52
        $region51: #{tpu_custom_call.1} parent=11 // pred_region
          _
        $region52: #{tpu_custom_call.1} parent=11 // pred_fallthru
          _
        // Predicated region
        $region53: #{tpu_custom_call.1} parent=11 // pred_check
          %p388 = pneg %p274
        $region54: #{tpu_custom_call.1} parent=11 // pred_check_branch
          %390 = sbr.rel (%p388) target = $region56
        $region55: #{tpu_custom_call.1} parent=11 // pred_region
          _
        $region56: #{tpu_custom_call.1} parent=11 // pred_fallthru
          _
        // Predicated region
        $region57: #{tpu_custom_call.1} parent=11 // pred_check
          %p391 = pneg %p295
        $region58: #{tpu_custom_call.1} parent=11 // pred_check_branch
          %393 = sbr.rel (%p391) target = $region60
        $region59: #{tpu_custom_call.1} parent=11 // pred_region
          _
        $region60: #{tpu_custom_call.1} parent=11 // pred_fallthru
          _
      $region12: #{tpu_custom_call.1} parent=5 // pred_fallthru
        _
      %p394 = scmp.lt.s32.totalorder %s21, 3
      // Predicated region
      $region61: #{tpu_custom_call.1} parent=5 // pred_check
        %p395 = pneg %p394
      $region62: #{tpu_custom_call.1} parent=5 // pred_check_branch
        %397 = sbr.rel (%p395) target = $region64
      $region63: #{tpu_custom_call.1} parent=5 // pred_region
        _
      $region64: #{tpu_custom_call.1} parent=5 // pred_fallthru
        _
      %p398 = scmp.le.s32.totalorder 1, %s21
      %p399 = scmp.lt.s32.totalorder %s21, 4
      %p400 = pnand %p398, %p399
      %p401 = pneg %p400
      // Predicated region
      $region65: #{tpu_custom_call.1} parent=5 // pred_check
        _
      $region66: #{tpu_custom_call.1} parent=5 // pred_check_branch
        %403 = sbr.rel (%p400) target = $region68
      $region67: #{tpu_custom_call.1} parent=5 // pred_region
        %s404 = ssub.s32 %s21, 1
        // Predicated region
        $region69: #{tpu_custom_call.1} parent=67 // pred_check
          %p405 = pneg %p190
        $region70: #{tpu_custom_call.1} parent=67 // pred_check_branch
          %407 = sbr.rel (%p405) target = $region72
        $region71: #{tpu_custom_call.1} parent=67 // pred_region
          %408 = dma.done [#allocation8], 1024
        $region72: #{tpu_custom_call.1} parent=67 // pred_fallthru
          _
        %s409 = smul.u32 2, %s31
        %p410 = scmp.lt.s32.totalorder %s409, 1
        %s411 = scalar_select %p410, %s409, 1
        %s412 = smul.addr %s411, 8
        %s413 = scalar_lea.vmem %s0, %s412
        %p414 = pneg %p59
        %p415 = pneg %p56
        %s416 = smul.u32 2, %s31
        %p417 = scmp.lt.s32.totalorder %s416, 1
        %s418 = scalar_select %p417, %s416, 1
        %s419 = smul.addr %s418, 8
        %s420 = scalar_lea.vmem %s1, %s419
        %p421 = pneg %p85
        %p422 = pneg %p82
        %p423 = pneg %p106
        %p424 = pneg %p103
        %p425 = pneg %p127
        %p426 = pneg %p124
        %p427 = pneg %p148
        %p428 = pneg %p145
        %p429 = pneg %p169
        %p430 = pneg %p166
        %p431 = pneg %p190
        %p432 = pneg %p187
        %p433 = pneg %p211
        %p434 = pneg %p208
        %p435 = pneg %p232
        %p436 = pneg %p229
        %p437 = pneg %p253
        %p438 = pneg %p250
        %p439 = pneg %p274
        %p440 = pneg %p271
        %p441 = pneg %p295
        %p442 = pneg %p292
        %p443 = pneg %p321
        %p444 = pneg %p318
        %s445 = smul.u32 2, %s31
        %p446 = scmp.lt.s32.totalorder %s445, 1
        %s447 = scalar_select %p446, %s445, 1
        %s448 = smul.addr %s447, 8
        %s449 = scalar_lea.vmem %s12, %s448
        %s450 = smul.u32 2, %s31
        %p451 = scmp.lt.s32.totalorder %s450, 1
        %s452 = scalar_select %p451, %s450, 1
        %s453 = smul.addr %s452, 8
        %s454 = scalar_lea.vmem %s0, %s453
        %s455 = smul.u32 2, %s31
        %s456 = smul.u32 2, %s31
        %p457 = scmp.lt.s32.totalorder %s456, 1
        %s458 = scalar_select %p457, %s456, 1
        %s459 = smul.addr %s458, 8
        %s460 = scalar_lea.vmem %s1, %s459
        %s461 = smul.u32 2, %s31
        %s462 = smul.u32 2, %s31
        %p463 = scmp.lt.s32.totalorder %s462, 1
        %s464 = scalar_select %p463, %s462, 1
        %s465 = smul.addr %s464, 8
        %s466 = scalar_lea.vmem %s12, %s465
        %s467 = smul.u32 2, %s31
        %s468 = smul.u32 %s31, 16
        %v469 = vlaneseq
        %v470 = vshrl.u32 %v469, 7
        %v471 = vadd.s32 %v470, 8
        %v472 = vstv %s468
        %v473 = vadd.s32 %v472, %v470
        %v474 = vadd.s32 %v472, %v471
        %vm475 = vcmp.lt.s32.totalorder %v473, 16
        %vm476 = vcmp.lt.s32.totalorder %v474, 16
        %v477 = vld [vmem:[%s454] sm:$0xff]
        %v478 = vld [vmem:[%s454 + $0x8] sm:$0xff]
        %v479 = vld [vmem:[%s2] sm:$0x3f]
        %v480 = vld [vmem:[%s3] sm:$0x1]
        %v482 = vlaneseq
        %v483 = vshrl.u32 %v482, 7
        %v484 = vsub.s32 0, %v483
        %v485 = vrot.slane %v480, %v484
        %vm487 = vcmask 48128
        %v489 = vsel %vm487, %v477, 0
        %v492 = vsel %vm487, %v478, 0
        %vm494 = vcmask 1045504
        %v496 = vsel %vm494, %v479, 0
        %498 = vmatprep.subr.mxu0 0.0
        %499 = vmatpush1.msra.mxu0 %v496
        %500 = vmatprep.subr.mxu0 0.0
        %501 = vmatpush1.msra.mxu0 0.0
        %502 = vmatprep.subr.mxu0 0.0
        %503 = vmatpush1.msra.mxu0 0.0
        %504 = vmatprep.subr.mxu0 0.0
        %505 = vmatpush1.msra.mxu0 0.0
        %506 = vmatprep.subr.mxu0 0.0
        %507 = vmatpush1.msra.mxu0 0.0
        %508 = vmatprep.subr.mxu0 0.0
        %509 = vmatpush1.msra.mxu0 0.0
        %510 = vmatprep.subr.mxu0 0.0
        %511 = vmatpush1.msra.mxu0 0.0
        %512 = vmatprep.subr.mxu0 0.0
        %513 = vmatpush1.msra.mxu0 0.0
        %514 = vmatprep.subr.mxu0 0.0
        %515 = vmatpush1.msra.mxu0 0.0
        %516 = vmatprep.subr.mxu0 0.0
        %517 = vmatpush1.msra.mxu0 0.0
        %518 = vmatprep.subr.mxu0 0.0
        %519 = vmatpush1.msra.mxu0 0.0
        %520 = vmatprep.subr.mxu0 0.0
        %521 = vmatpush1.msra.mxu0 0.0
        %522 = vmatprep.subr.mxu0 0.0
        %523 = vmatpush1.msra.mxu0 0.0
        %524 = vmatprep.subr.mxu0 0.0
        %525 = vmatpush1.msra.mxu0 0.0
        %526 = vmatprep.subr.mxu0 0.0
        %527 = vmatpush1.msra.mxu0 0.0
        %528 = vmatprep.subr.mxu0 0.0
        %529 = vmatpush1.msra.mxu0 0.0
        %530 = vmatprep.subr.mxu0 0.0
        %531 = vmatpush1.msra.mxu0 0.0
        %532 = vmatprep.subr.mxu0 0.0
        %533 = vmatpush1.msra.mxu0 0.0
        %534 = vmatprep.subr.mxu0 0.0
        %535 = vmatpush1.msra.mxu0 0.0
        %536 = vmatprep.subr.mxu0 0.0
        %537 = vmatpush1.msra.mxu0 0.0
        %538 = vmatprep.subr.mxu0 0.0
        %539 = vmatpush1.msra.mxu0 0.0
        %540 = vmatprep.subr.mxu0 0.0
        %541 = vmatpush1.msra.mxu0 0.0
        %542 = vmatprep.subr.mxu0 0.0
        %543 = vmatpush1.msra.mxu0 0.0
        %544 = vmatprep.subr.mxu0 0.0
        %545 = vmatpush1.msra.mxu0 0.0
        %546 = vmatprep.subr.mxu0 0.0
        %547 = vmatpush1.msra.mxu0 0.0
        %548 = vmatprep.subr.mxu0 0.0
        %549 = vmatpush1.msra.mxu0 0.0
        %550 = vmatprep.subr.mxu0 0.0
        %551 = vmatpush1.msra.mxu0 0.0
        %552 = vmatprep.subr.mxu0 0.0
        %553 = vmatpush1.msra.mxu0 0.0
        %554 = vmatprep.subr.mxu0 0.0
        %555 = vmatpush1.msra.mxu0 0.0
        %556 = vmatprep.subr.mxu0 0.0
        %557 = vmatpush1.msra.mxu0 0.0
        %558 = vmatprep.subr.mxu0 0.0
        %559 = vmatpush1.msra.mxu0 0.0
        %560 = vmatprep.subr.mxu0 0.0
        %561 = vmatpush1.msra.mxu0 0.0
        %562 = vmatprep.mubr.f32.mxu0 0.0
        %563 = vmatmul.mubr.f32.gmra.mrb[0].mxu0 %v489
        %v564 = vpop.f32.mrb[0].mxu0
        %v565 = vadd.f32 %v485, %v564
        %v566 = vpop.f32.mrb[0].mxu0
        %567 = vmatprep.mubr.f32.mxu0 0.0
        %568 = vmatmul.mubr.f32.gmra.mrb[0].mxu0 %v492
        %v569 = vpop.f32.mrb[0].mxu0
        %v570 = vadd.f32 %v485, %v569
        %v571 = vpop.f32.mrb[0].mxu0
        %572 = vdwg.mxu0
        %v573 = vmax.f32 %v565, 0.0
        %v574 = vmax.f32 %v570, 0.0
        %p575 = scmp.eq.s32.totalorder %s30, 0
        // Predicated region
        $region73: #{tpu_custom_call.1} parent=67 // pred_check
          %p576 = pneg %p575
        $region74: #{tpu_custom_call.1} parent=67 // pred_check_branch
          %578 = sbr.rel (%p576) target = $region76
        $region75: #{tpu_custom_call.1} parent=67 // pred_region
          %p579 = scmp.eq.s32.totalorder %s31, 0
          // Predicated region
          $region77: #{tpu_custom_call.1} parent=75 // pred_check
            %p580 = pneg %p579
          $region78: #{tpu_custom_call.1} parent=75 // pred_check_branch
            %582 = sbr.rel (%p580) target = $region80
          $region79: #{tpu_custom_call.1} parent=75 // pred_region
            %vm583 = vcmask 516096
            %584 = vst.msk [vmem:[#allocation2] sm:$0x1] %vm583, 0.0
            %585 = vst.msk [vmem:[#allocation3] sm:$0x1] %vm583, 0.0
            %586 = vst.msk [vmem:[#allocation4] sm:$0x1] %vm583, 0.0
            %587 = vst.msk [vmem:[#allocation5] sm:$0x1] %vm583, 0.0
          $region80: #{tpu_custom_call.1} parent=75 // pred_fallthru
            _
          %v588 = vsel %vm475, 1, 0
          %v589 = vsel %vm476, 1, 0
          %vm590 = vcmp.eq.s32.totalorder %v588, 1
          %vm591 = vcmp.eq.s32.totalorder %v589, 1
          %v592 = vsel %vm590, %v573, 0.0
          %v593 = vsel %vm591, %v574, 0.0
          %v594 = vld [vmem:[#allocation2] sm:$0x1]
          %vm595 = vcmask 523264
          %v596 = vsel %vm595, %v592, 0.0
          %v597 = vsel %vm595, %v593, 0.0
          %v598 = vadd.f32 %v596, %v597
          %v599 = vrot.slane %v598, 4
          %v600 = vadd.f32 %v598, %v599
          %v601 = vrot.slane %v600, 2
          %v602 = vadd.f32 %v600, %v601
          %v603 = vrot.slane %v602, 1
          %v604 = vadd.f32 %v602, %v603
          %v605 = vadd.f32 %v594, %v604
          %vm606 = vcmask 516096
          %607 = vst.msk [vmem:[#allocation2] sm:$0x1] %vm606, %v605
          %v608 = vld [vmem:[#allocation3] sm:$0x1]
          %v609 = vmul.f32 %v592, %v592
          %v610 = vmul.f32 %v593, %v593
          %v611 = vsel %vm595, %v609, 0.0
          %v612 = vsel %vm595, %v610, 0.0
          %v613 = vadd.f32 %v611, %v612
          %v614 = vrot.slane %v613, 4
          %v615 = vadd.f32 %v613, %v614
          %v616 = vrot.slane %v615, 2
          %v617 = vadd.f32 %v615, %v616
          %v618 = vrot.slane %v617, 1
          %v619 = vadd.f32 %v617, %v618
          %v620 = vadd.f32 %v608, %v619
          %621 = vst.msk [vmem:[#allocation3] sm:$0x1] %vm606, %v620
        $region76: #{tpu_custom_call.1} parent=67 // pred_fallthru
          _
        %p622 = scmp.gt.s32.totalorder %s30, 0
        // Predicated region
        $region81: #{tpu_custom_call.1} parent=67 // pred_check
          %p623 = pneg %p622
        $region82: #{tpu_custom_call.1} parent=67 // pred_check_branch
          %625 = sbr.rel (%p623) target = $region84
        $region83: #{tpu_custom_call.1} parent=67 // pred_region
          %v626 = vld [vmem:[#allocation2] sm:$0x1]
          %v627 = vmul.f32 %v626, 0.0625
          %v628 = vld [vmem:[#allocation3] sm:$0x1]
          %v629 = vmul.f32 %v628, 0.0625
          %v630 = vmul.f32 %v627, %v627
          %v631 = vsub.f32 %v629, %v630
          %v633 = vlaneseq
          %v634 = vshrl.u32 %v633, 7
          %v635 = vsub.s32 0, %v634
          %v636 = vrot.slane %v627, %v635
          %v638 = vsub.f32 %v573, %v636
          %v639 = vsub.f32 %v574, %v636
          %v640 = vadd.f32 %v631, 1e-05
          %v641 = vrsqrt.pop %v640
          %v642 = vld [vmem:[%s4] sm:$0x1]
          %v643 = vmul.f32 %v641, %v642
          %v645 = vlaneseq
          %v646 = vshrl.u32 %v645, 7
          %v647 = vsub.s32 0, %v646
          %v648 = vrot.slane %v643, %v647
          %v650 = vmul.f32 %v638, %v648
          %v651 = vmul.f32 %v639, %v648
          %v652 = vld [vmem:[%s5] sm:$0x1]
          %v654 = vlaneseq
          %v655 = vshrl.u32 %v654, 7
          %v656 = vsub.s32 0, %v655
          %v657 = vrot.slane %v652, %v656
          %v659 = vadd.f32 %v650, %v657
          %v660 = vadd.f32 %v651, %v657
          %v661 = vld [vmem:[#allocation7] sm:$0xff]
          %v662 = vld [vmem:[#allocation7 + $0x8] sm:$0xff]
          %v663 = vld [vmem:[#allocation7 + $0x10] sm:$0xff]
          %v664 = vld [vmem:[#allocation7 + $0x18] sm:$0xff]
          %v665 = vld [vmem:[#allocation7 + $0x20] sm:$0xff]
          %v666 = vld [vmem:[#allocation7 + $0x28] sm:$0xff]
          %v667 = vld [vmem:[#allocation7 + $0x30] sm:$0xff]
          %v668 = vld [vmem:[#allocation7 + $0x38] sm:$0xff]
          %v669 = vld [vmem:[%s7] sm:$0x1]
          %v671 = vlaneseq
          %v672 = vshrl.u32 %v671, 7
          %v673 = vsub.s32 0, %v672
          %v674 = vrot.slane %v669, %v673
          %vm676 = vcmask 523264
          %v678 = vsel %vm676, %v659, 0
          %v681 = vsel %vm676, %v660, 0
          %683 = vmatprep.subr.mxu0 0.0
          %684 = vmatpush1.msra.mxu0 %v661
          %685 = vmatprep.subr.mxu0 0.0
          %686 = vmatpush1.msra.mxu0 %v662
          %687 = vmatprep.subr.mxu0 0.0
          %688 = vmatpush1.msra.mxu0 %v663
          %689 = vmatprep.subr.mxu0 0.0
          %690 = vmatpush1.msra.mxu0 %v664
          %691 = vmatprep.subr.mxu0 0.0
          %692 = vmatpush1.msra.mxu0 %v665
          %693 = vmatprep.subr.mxu0 0.0
          %694 = vmatpush1.msra.mxu0 %v666
          %695 = vmatprep.subr.mxu0 0.0
          %696 = vmatpush1.msra.mxu0 %v667
          %697 = vmatprep.subr.mxu0 0.0
          %698 = vmatpush1.msra.mxu0 %v668
          %699 = vmatprep.subr.mxu0 0.0
          %700 = vmatpush1.msra.mxu0 0.0
          %701 = vmatprep.subr.mxu0 0.0
          %702 = vmatpush1.msra.mxu0 0.0
          %703 = vmatprep.subr.mxu0 0.0
          %704 = vmatpush1.msra.mxu0 0.0
          %705 = vmatprep.subr.mxu0 0.0
          %706 = vmatpush1.msra.mxu0 0.0
          %707 = vmatprep.subr.mxu0 0.0
          %708 = vmatpush1.msra.mxu0 0.0
          %709 = vmatprep.subr.mxu0 0.0
          %710 = vmatpush1.msra.mxu0 0.0
          %711 = vmatprep.subr.mxu0 0.0
          %712 = vmatpush1.msra.mxu0 0.0
          %713 = vmatprep.subr.mxu0 0.0
          %714 = vmatpush1.msra.mxu0 0.0
          %715 = vmatprep.subr.mxu0 0.0
          %716 = vmatpush1.msra.mxu0 0.0
          %717 = vmatprep.subr.mxu0 0.0
          %718 = vmatpush1.msra.mxu0 0.0
          %719 = vmatprep.subr.mxu0 0.0
          %720 = vmatpush1.msra.mxu0 0.0
          %721 = vmatprep.subr.mxu0 0.0
          %722 = vmatpush1.msra.mxu0 0.0
          %723 = vmatprep.subr.mxu0 0.0
          %724 = vmatpush1.msra.mxu0 0.0
          %725 = vmatprep.subr.mxu0 0.0
          %726 = vmatpush1.msra.mxu0 0.0
          %727 = vmatprep.subr.mxu0 0.0
          %728 = vmatpush1.msra.mxu0 0.0
          %729 = vmatprep.subr.mxu0 0.0
          %730 = vmatpush1.msra.mxu0 0.0
          %731 = vmatprep.subr.mxu0 0.0
          %732 = vmatpush1.msra.mxu0 0.0
          %733 = vmatprep.subr.mxu0 0.0
          %734 = vmatpush1.msra.mxu0 0.0
          %735 = vmatprep.subr.mxu0 0.0
          %736 = vmatpush1.msra.mxu0 0.0
          %737 = vmatprep.subr.mxu0 0.0
          %738 = vmatpush1.msra.mxu0 0.0
          %739 = vmatprep.subr.mxu0 0.0
          %740 = vmatpush1.msra.mxu0 0.0
          %741 = vmatprep.subr.mxu0 0.0
          %742 = vmatpush1.msra.mxu0 0.0
          %743 = vmatprep.subr.mxu0 0.0
          %744 = vmatpush1.msra.mxu0 0.0
          %745 = vmatprep.subr.mxu0 0.0
          %746 = vmatpush1.msra.mxu0 0.0
          %747 = vmatprep.mubr.f32.mxu0 0.0
          %748 = vmatmul.mubr.f32.gmra.mrb[0].mxu0 %v678
          %v749 = vpop.f32.mrb[0].mxu0
          %v750 = vadd.f32 %v674, %v749
          %v751 = vpop.f32.mrb[0].mxu0
          %752 = vmatprep.mubr.f32.mxu0 0.0
          %753 = vmatmul.mubr.f32.gmra.mrb[0].mxu0 %v681
          %v754 = vpop.f32.mrb[0].mxu0
          %v755 = vadd.f32 %v674, %v754
          %v756 = vpop.f32.mrb[0].mxu0
          %757 = vdwg.mxu0
          %v758 = vmax.f32 %v750, 0.0
          %v759 = vmax.f32 %v755, 0.0
          %p760 = scmp.eq.s32.totalorder %s30, 1
          // Predicated region
          $region85: #{tpu_custom_call.1} parent=83 // pred_check
            %p761 = pneg %p760
          $region86: #{tpu_custom_call.1} parent=83 // pred_check_branch
            %763 = sbr.rel (%p761) target = $region88
          $region87: #{tpu_custom_call.1} parent=83 // pred_region
            %v764 = vsel %vm475, 1, 0
            %v765 = vsel %vm476, 1, 0
            %vm766 = vcmp.eq.s32.totalorder %v764, 1
            %vm767 = vcmp.eq.s32.totalorder %v765, 1
            %v768 = vsel %vm766, %v758, 0.0
            %v769 = vsel %vm767, %v759, 0.0
            %v770 = vld [vmem:[#allocation4] sm:$0x1]
            %v771 = vsel %vm676, %v768, 0.0
            %v772 = vsel %vm676, %v769, 0.0
            %v773 = vadd.f32 %v771, %v772
            %v774 = vrot.slane %v773, 4
            %v775 = vadd.f32 %v773, %v774
            %v776 = vrot.slane %v775, 2
            %v777 = vadd.f32 %v775, %v776
            %v778 = vrot.slane %v777, 1
            %v779 = vadd.f32 %v777, %v778
            %v780 = vadd.f32 %v770, %v779
            %vm781 = vcmask 516096
            %782 = vst.msk [vmem:[#allocation4] sm:$0x1] %vm781, %v780
            %v783 = vld [vmem:[#allocation5] sm:$0x1]
            %v784 = vmul.f32 %v768, %v768
            %v785 = vmul.f32 %v769, %v769
            %v786 = vsel %vm676, %v784, 0.0
            %v787 = vsel %vm676, %v785, 0.0
            %v788 = vadd.f32 %v786, %v787
            %v789 = vrot.slane %v788, 4
            %v790 = vadd.f32 %v788, %v789
            %v791 = vrot.slane %v790, 2
            %v792 = vadd.f32 %v790, %v791
            %v793 = vrot.slane %v792, 1
            %v794 = vadd.f32 %v792, %v793
            %v795 = vadd.f32 %v783, %v794
            %796 = vst.msk [vmem:[#allocation5] sm:$0x1] %vm781, %v795
          $region88: #{tpu_custom_call.1} parent=83 // pred_fallthru
            _
          %p797 = scmp.eq.s32.totalorder %s30, 2
          // Predicated region
          $region89: #{tpu_custom_call.1} parent=83 // pred_check
            %p798 = pneg %p797
          $region90: #{tpu_custom_call.1} parent=83 // pred_check_branch
            %800 = sbr.rel (%p798) target = $region92
          $region91: #{tpu_custom_call.1} parent=83 // pred_region
            %v801 = vld [vmem:[#allocation4] sm:$0x1]
            %v802 = vmul.f32 %v801, 0.0625
            %v803 = vld [vmem:[#allocation5] sm:$0x1]
            %v804 = vmul.f32 %v803, 0.0625
            %v805 = vmul.f32 %v802, %v802
            %v806 = vsub.f32 %v804, %v805
            %v808 = vlaneseq
            %v809 = vshrl.u32 %v808, 7
            %v810 = vsub.s32 0, %v809
            %v811 = vrot.slane %v802, %v810
            %v813 = vsub.f32 %v758, %v811
            %v814 = vsub.f32 %v759, %v811
            %v815 = vadd.f32 %v806, 1e-05
            %v816 = vrsqrt.pop %v815
            %v817 = vld [vmem:[%s8] sm:$0x1]
            %v818 = vmul.f32 %v816, %v817
            %v820 = vlaneseq
            %v821 = vshrl.u32 %v820, 7
            %v822 = vsub.s32 0, %v821
            %v823 = vrot.slane %v818, %v822
            %v825 = vmul.f32 %v813, %v823
            %v826 = vmul.f32 %v814, %v823
            %v827 = vld [vmem:[%s9] sm:$0x1]
            %v829 = vlaneseq
            %v830 = vshrl.u32 %v829, 7
            %v831 = vsub.s32 0, %v830
            %v832 = vrot.slane %v827, %v831
            %v834 = vadd.f32 %v825, %v832
            %v835 = vadd.f32 %v826, %v832
            %v836 = vld [vmem:[%s460] sm:$0xff]
            %v837 = vld [vmem:[%s460 + $0x8] sm:$0xff]
            %v838 = vmul.f32 %v834, %v836
            %v839 = vmul.f32 %v835, %v837
            %v840 = vld [vmem:[%s10] sm:$0x1]
            %v842 = vlaneseq
            %v843 = vshrl.u32 %v842, 7
            %v844 = vsub.s32 0, %v843
            %v845 = vrot.slane %v840, %v844
            %v847 = vmul.f32 %v838, %v845
            %v848 = vmul.f32 %v839, %v845
            %v849 = vsel %vm676, %v847, 0.0
            %850 = vadd.xlane.f32.xlu0 %v849
            %v851 = vpop.xlane.xlu0 %850
            %v852 = vsel %vm676, %v848, 0.0
            %853 = vadd.xlane.f32.xlu0 %v852
            %v854 = vpop.xlane.xlu0 %853
            %v855 = vld [vmem:[#allocation6] sm:$0x1]
            %v857 = vlaneseq
            %v858 = vshrl.u32 %v857, 7
            %v859 = vsub.s32 0, %v858
            %v860 = vrot.slane %v855, %v859
            %v862 = vadd.f32 %v851, %v860
            %v863 = vadd.f32 %v854, %v860
            %vm864 = vcmask 7168
            %865 = vst.msk [vmem:[%s466] sm:$0xff] %vm864, %v862
            %866 = vst.msk [vmem:[%s466 + $0x8] sm:$0xff] %vm864, %v863
          $region92: #{tpu_custom_call.1} parent=83 // pred_fallthru
            _
        $region84: #{tpu_custom_call.1} parent=67 // pred_fallthru
          _
        %s867 = smul.u32 2, %s31
        %p868 = scmp.lt.s32.totalorder %s867, 1
        %s869 = scalar_select %p868, %s867, 1
        %s870 = smul.addr %s869, 8
        %s871 = scalar_lea.vmem %s12, %s870
        // Predicated region
        $region93: #{tpu_custom_call.1} parent=67 // pred_check
          %p872 = pneg %p318
        $region94: #{tpu_custom_call.1} parent=67 // pred_check_branch
          %874 = sbr.rel (%p872) target = $region96
        $region95: #{tpu_custom_call.1} parent=67 // pred_region
          %s875 = smul.u32 2, %s31
        $region96: #{tpu_custom_call.1} parent=67 // pred_fallthru
          _
        // Predicated region
        $region97: #{tpu_custom_call.1} parent=67 // pred_check
          %p876 = pneg %p318
        $region98: #{tpu_custom_call.1} parent=67 // pred_check_branch
          %878 = sbr.rel (%p876) target = $region100
        $region99: #{tpu_custom_call.1} parent=67 // pred_region
          %s879 = smul.u32 2, %s31
          %p880 = scmp.lt.s32.totalorder %s879, 1
          %s881 = scalar_select %p880, %s879, 1
          %s882 = smul.addr %s881, 8
          %s883 = scalar_lea.vmem %s12, %s882
        $region100: #{tpu_custom_call.1} parent=67 // pred_fallthru
          _
      $region68: #{tpu_custom_call.1} parent=5 // pred_fallthru
        _
      %p884 = scmp.le.s32.totalorder 2, %s21
      // Predicated region
      $region101: #{tpu_custom_call.1} parent=5 // pred_check
        %p885 = pneg %p884
      $region102: #{tpu_custom_call.1} parent=5 // pred_check_branch
        %887 = sbr.rel (%p885) target = $region104
      $region103: #{tpu_custom_call.1} parent=5 // pred_region
        %s888 = ssub.s32 %s21, 2
      $region104: #{tpu_custom_call.1} parent=5 // pred_fallthru
        _
    $region6: #{tpu_custom_call.1} parent=1 // loop_footer
      %s25 = sadd.s32 1, %s21
    $region7: #{tpu_custom_call.1} parent=1 // loop_footer_branch
      %20 = sbr.rel target = $region3
    $region8: #{tpu_custom_call.1} parent=1 // loop_exit
      _
    %889 = vsyncpa [#allocation8], 1
    %s890 = scalar_lea.sflag [#allocation8], 1
    %891 = vsyncpa %s890, 1

</llo_original>
